<compile_context>
chip_gen: v5e
topology: v5e:2x2
jax: 0.10.0
libtpu: 0.0.40
codegen_flags: <defaults>
</compile_context>

<pallas_src>
import functools

import jax
import jax.numpy as jnp
from jax.experimental import pallas as pl
from jax.experimental.pallas import tpu as pltpu

_LANE = 128
_SUB = 8


def _value_stats_kernel(pred_ref, targ_ref, out_ref,
                        s_p, s_t, s_pp, s_tt, s_pt, s_dd,
                        mn_p, mn_t, mx_p, mx_t, *, total):
    # pred_ref / targ_ref: (block_rows, 128) tiles in VMEM (native dtype).
    # out_ref: (8,) f32 in SMEM
    #   [loss, mean_pred, mean_targ, min_pred, min_targ, max_pred, max_targ, corr]
    # s_*, mn_*, mx_*: (8, 128) f32 VMEM accumulators, persistent across grid.
    pid = pl.program_id(0)
    nblk = pl.num_programs(0)

    @pl.when(pid == 0)
    def _init():
        zeros = jnp.zeros((_SUB, _LANE), jnp.float32)
        pos_inf = jnp.full((_SUB, _LANE), jnp.inf, jnp.float32)
        neg_inf = jnp.full((_SUB, _LANE), -jnp.inf, jnp.float32)
        s_p[...] = zeros
        s_t[...] = zeros
        s_pp[...] = zeros
        s_tt[...] = zeros
        s_pt[...] = zeros
        s_dd[...] = zeros
        mn_p[...] = pos_inf
        mn_t[...] = pos_inf
        mx_p[...] = neg_inf
        mx_t[...] = neg_inf

    p = pred_ref[...].astype(jnp.float32)   # (block_rows, 128)
    t = targ_ref[...].astype(jnp.float32)
    block_rows = p.shape[0]
    g = block_rows // _SUB

    # Validity mask for the zero-padded tail (global flat index < total).
    row_ids = jax.lax.broadcasted_iota(jnp.int32, p.shape, 0)
    lane_ids = jax.lax.broadcasted_iota(jnp.int32, p.shape, 1)
    gidx = (pid * block_rows + row_ids) * _LANE + lane_ids
    valid = gidx < total

    d = p - t  # padded slots: 0 - 0 = 0 -> contribute nothing to the sums

    def fold_sum(x):
        return jnp.sum(x.reshape(g, _SUB, _LANE), axis=0)

    def fold_min(x):
        return jnp.min(x.reshape(g, _SUB, _LANE), axis=0)

    def fold_max(x):
        return jnp.max(x.reshape(g, _SUB, _LANE), axis=0)

    # Element-wise (VALU) accumulation only; no cross-lane reductions here.
    s_p[...] += fold_sum(p)
    s_t[...] += fold_sum(t)
    s_pp[...] += fold_sum(p * p)
    s_tt[...] += fold_sum(t * t)
    s_pt[...] += fold_sum(p * t)
    s_dd[...] += fold_sum(d * d)
    mn_p[...] = jnp.minimum(mn_p[...], fold_min(jnp.where(valid, p, jnp.inf)))
    mn_t[...] = jnp.minimum(mn_t[...], fold_min(jnp.where(valid, t, jnp.inf)))
    mx_p[...] = jnp.maximum(mx_p[...], fold_max(jnp.where(valid, p, -jnp.inf)))
    mx_t[...] = jnp.maximum(mx_t[...], fold_max(jnp.where(valid, t, -jnp.inf)))

    @pl.when(pid == nblk - 1)
    def _finalize():
        n = jnp.float32(total)
        sum_p = jnp.sum(s_p[...])
        sum_t = jnp.sum(s_t[...])
        sum_pp = jnp.sum(s_pp[...])
        sum_tt = jnp.sum(s_tt[...])
        sum_pt = jnp.sum(s_pt[...])
        sum_dd = jnp.sum(s_dd[...])

        mean_p = sum_p / n
        mean_t = sum_t / n
        loss = sum_dd / n  # kept as a separate diff^2 accumulator for accuracy

        # Pearson correlation (ddof cancels in the ratio).
        # TODO(synk): naive sum-of-squares form can cancel when |mean| >> std;
        # a two-pass centered reduction would be safer for extreme inputs.
        cov = sum_pt - n * mean_p * mean_t
        var_p = jnp.maximum(sum_pp - n * mean_p * mean_p, jnp.float32(0.0))
        var_t = jnp.maximum(sum_tt - n * mean_t * mean_t, jnp.float32(0.0))
        denom = var_p * var_t
        safe = jnp.where(denom > 0, denom, jnp.float32(1.0))  # avoid rsqrt(0)=inf
        corr = jnp.where(denom > 0, cov * jax.lax.rsqrt(safe),
                         jnp.float32(jnp.nan))

        out_ref[0] = loss
        out_ref[1] = mean_p
        out_ref[2] = mean_t
        out_ref[3] = jnp.min(mn_p[...])
        out_ref[4] = jnp.min(mn_t[...])
        out_ref[5] = jnp.max(mx_p[...])
        out_ref[6] = jnp.max(mx_t[...])
        out_ref[7] = corr


def value_loss(pred, targ, *, max_block_rows=512):
    """Pallas equivalent of ValueLoss(ValueL2).forward(pred, targ).

    pred, targ: [B, 1] (or any identically shaped arrays), any float dtype.
    Returns (loss, info) matching the PyTorch module.
    """
    assert pred.shape == targ.shape
    batch = pred.shape[0]
    total = 1
    for s in pred.shape:
        total *= s

    # Sublane-dense (rows, 128) layout; rows padded to a multiple of the tile.
    rows_needed = max(1, -(-total // _LANE))
    rows8 = -(-rows_needed // _SUB) * _SUB
    block_rows = min(max_block_rows, rows8)          # multiple of 8
    padded_rows = -(-rows8 // block_rows) * block_rows
    num_blocks = padded_rows // block_rows
    padded = padded_rows * _LANE

    p_flat = pred.reshape(-1)
    t_flat = targ.reshape(-1)
    if padded != total:
        p_flat = jnp.pad(p_flat, (0, padded - total))
        t_flat = jnp.pad(t_flat, (0, padded - total))
    # Native dtype (no host-side f32 cast); the kernel upcasts to f32.
    p2 = p_flat.reshape(padded_rows, _LANE)
    t2 = t_flat.reshape(padded_rows, _LANE)

    kernel = functools.partial(_value_stats_kernel, total=total)

    stats = pl.pallas_call(
        kernel,
        out_shape=jax.ShapeDtypeStruct((8,), jnp.float32),
        grid=(num_blocks,),
        in_specs=[
            pl.BlockSpec((block_rows, _LANE), lambda i: (i, 0)),
            pl.BlockSpec((block_rows, _LANE), lambda i: (i, 0)),
        ],
        out_specs=pl.BlockSpec(memory_space=pltpu.MemorySpace.SMEM),
        scratch_shapes=[pltpu.VMEM((_SUB, _LANE), jnp.float32)
                        for _ in range(10)],
        compiler_params=pltpu.CompilerParams(
            dimension_semantics=("arbitrary",)),
    )(p2, t2)

    loss = stats[0]
    # `len(pred) > 1` is a static Python condition, exactly as in PyTorch.
    corr = stats[7] if batch > 1 else jnp.float32(jnp.nan)

    info = {
        "mean_pred": stats[1],
        "mean_targ": stats[2],
        "min_pred": stats[3],
        "min_targ": stats[4],
        "max_pred": stats[5],
        "max_targ": stats[6],
        "corr": corr,
    }
    return loss, info


def _reference(pred, targ):
    p32 = pred.astype(jnp.float32)
    t32 = targ.astype(jnp.float32)
    loss = jnp.mean((p32 - t32) ** 2)
    corr = jnp.corrcoef(jnp.stack([p32.squeeze(), t32.squeeze()]))[0, 1]
    return loss, corr


if __name__ == "__main__":
    key = jax.random.PRNGKey(0)
    kp, kt = jax.random.split(key)

    # Small value-head-style inputs: [batch, 1].
    B = 8
    pred = jax.random.normal(kp, (B, 1), dtype=jnp.float32)
    targ = 0.7 * pred + 0.3 * jax.random.normal(kt, (B, 1), dtype=jnp.float32)

    loss, info = value_loss(pred, targ)
    jax.block_until_ready(loss)
    jax.block_until_ready(info)

    ref_loss, ref_corr = _reference(pred, targ)
    assert jnp.allclose(loss, ref_loss, rtol=1e-5, atol=1e-5)
    assert jnp.allclose(info["mean_pred"], jnp.mean(pred), rtol=1e-5, atol=1e-5)
    assert jnp.allclose(info["mean_targ"], jnp.mean(targ), rtol=1e-5, atol=1e-5)
    assert jnp.allclose(info["min_pred"], jnp.min(pred), rtol=1e-5, atol=1e-5)
    assert jnp.allclose(info["min_targ"], jnp.min(targ), rtol=1e-5, atol=1e-5)
    assert jnp.allclose(info["max_pred"], jnp.max(pred), rtol=1e-5, atol=1e-5)
    assert jnp.allclose(info["max_targ"], jnp.max(targ), rtol=1e-5, atol=1e-5)
    assert jnp.allclose(info["corr"], ref_corr, rtol=1e-4, atol=1e-4)

    # Multi-tile path: batch not a multiple of 128, small tiles to force
    # several grid steps over the persistent accumulators.
    B2 = 2500
    kp2, kt2 = jax.random.split(jax.random.PRNGKey(1))
    pred2 = jax.random.normal(kp2, (B2, 1), dtype=jnp.float32) + 0.5
    targ2 = 0.6 * pred2 + 0.4 * jax.random.normal(kt2, (B2, 1), dtype=jnp.float32)
    loss2, info2 = value_loss(pred2, targ2, max_block_rows=8)
    jax.block_until_ready(loss2)
    ref_loss2, ref_corr2 = _reference(pred2, targ2)
    assert jnp.allclose(loss2, ref_loss2, rtol=1e-5, atol=1e-5)
    assert jnp.allclose(info2["mean_pred"], jnp.mean(pred2), rtol=1e-5, atol=1e-5)
    assert jnp.allclose(info2["min_targ"], jnp.min(targ2), rtol=1e-5, atol=1e-5)
    assert jnp.allclose(info2["max_pred"], jnp.max(pred2), rtol=1e-5, atol=1e-5)
    assert jnp.allclose(info2["corr"], ref_corr2, rtol=1e-4, atol=1e-4)

    # Native-dtype path (no host upcast): bf16 inputs, f32 math in-kernel.
    pred_bf = pred2.astype(jnp.bfloat16)
    targ_bf = targ2.astype(jnp.bfloat16)
    loss_bf, info_bf = value_loss(pred_bf, targ_bf, max_block_rows=8)
    jax.block_until_ready(loss_bf)
    ref_loss_bf, _ = _reference(pred_bf, targ_bf)
    assert jnp.allclose(loss_bf, ref_loss_bf, rtol=1e-5, atol=1e-5)
    assert jnp.allclose(info_bf["min_pred"],
                        jnp.min(pred_bf).astype(jnp.float32),
                        rtol=1e-6, atol=1e-6)

    print("KERNEL_OK")
</pallas_src>

<mosaic_0001>
module attributes {stable_mosaic.version = 11 : i64} {
  func.func @_value_stats_kernel(%arg0: i32, %arg1: memref<8x128xf32, #tpu.memory_space<vmem>>, %arg2: memref<8x128xf32, #tpu.memory_space<vmem>>, %arg3: memref<8xf32, #tpu.memory_space<smem>>, %arg4: memref<8x128xf32, #tpu.memory_space<vmem>>, %arg5: memref<8x128xf32, #tpu.memory_space<vmem>>, %arg6: memref<8x128xf32, #tpu.memory_space<vmem>>, %arg7: memref<8x128xf32, #tpu.memory_space<vmem>>, %arg8: memref<8x128xf32, #tpu.memory_space<vmem>>, %arg9: memref<8x128xf32, #tpu.memory_space<vmem>>, %arg10: memref<8x128xf32, #tpu.memory_space<vmem>>, %arg11: memref<8x128xf32, #tpu.memory_space<vmem>>, %arg12: memref<8x128xf32, #tpu.memory_space<vmem>>, %arg13: memref<8x128xf32, #tpu.memory_space<vmem>>) attributes {dimension_semantics = [#tpu.dimension_semantics<arbitrary>], iteration_bounds = array<i64: 1>, scalar_prefetch = 0 : i64, scratch_operands = 10 : i64, tpu.core_type = #tpu.core_type<tc>, window_params = [{transform_indices = @transform_0, window_bounds = array<i64: 8, 128>}, {transform_indices = @transform_1, window_bounds = array<i64: 8, 128>}, {transform_indices = @transform_2, window_bounds = array<i64: 8>}]} {
    %c0_i32 = arith.constant 0 : i32
    %0 = arith.cmpi eq, %arg0, %c0_i32 : i32
    %1 = arith.extui %0 : i1 to i32
    %c0_i32_0 = arith.constant 0 : i32
    %2 = arith.cmpi ne, %1, %c0_i32_0 : i32
    scf.if %2 {
      %cst_60 = arith.constant 0.000000e+00 : f32
      %81 = vector.broadcast %cst_60 : f32 to vector<8x128xf32>
      %cst_61 = arith.constant 0x7F800000 : f32
      %82 = vector.broadcast %cst_61 : f32 to vector<8x128xf32>
      %cst_62 = arith.constant 0xFF800000 : f32
      %83 = vector.broadcast %cst_62 : f32 to vector<8x128xf32>
      %c0_63 = arith.constant 0 : index
      %c0_64 = arith.constant 0 : index
      %84 = vector.load %arg4[%c0_63, %c0_64] : memref<8x128xf32, #tpu.memory_space<vmem>>, vector<8x128xf32>
      tpu.vector_store %arg4[%c0_63, %c0_64], %81 {strides = array<i32>} : memref<8x128xf32, #tpu.memory_space<vmem>>, vector<8x128xf32>,
      %c0_65 = arith.constant 0 : index
      %c0_66 = arith.constant 0 : index
      %85 = vector.load %arg5[%c0_65, %c0_66] : memref<8x128xf32, #tpu.memory_space<vmem>>, vector<8x128xf32>
      tpu.vector_store %arg5[%c0_65, %c0_66], %81 {strides = array<i32>} : memref<8x128xf32, #tpu.memory_space<vmem>>, vector<8x128xf32>,
      %c0_67 = arith.constant 0 : index
      %c0_68 = arith.constant 0 : index
      %86 = vector.load %arg6[%c0_67, %c0_68] : memref<8x128xf32, #tpu.memory_space<vmem>>, vector<8x128xf32>
      tpu.vector_store %arg6[%c0_67, %c0_68], %81 {strides = array<i32>} : memref<8x128xf32, #tpu.memory_space<vmem>>, vector<8x128xf32>,
      %c0_69 = arith.constant 0 : index
      %c0_70 = arith.constant 0 : index
      %87 = vector.load %arg7[%c0_69, %c0_70] : memref<8x128xf32, #tpu.memory_space<vmem>>, vector<8x128xf32>
      tpu.vector_store %arg7[%c0_69, %c0_70], %81 {strides = array<i32>} : memref<8x128xf32, #tpu.memory_space<vmem>>, vector<8x128xf32>,
      %c0_71 = arith.constant 0 : index
      %c0_72 = arith.constant 0 : index
      %88 = vector.load %arg8[%c0_71, %c0_72] : memref<8x128xf32, #tpu.memory_space<vmem>>, vector<8x128xf32>
      tpu.vector_store %arg8[%c0_71, %c0_72], %81 {strides = array<i32>} : memref<8x128xf32, #tpu.memory_space<vmem>>, vector<8x128xf32>,
      %c0_73 = arith.constant 0 : index
      %c0_74 = arith.constant 0 : index
      %89 = vector.load %arg9[%c0_73, %c0_74] : memref<8x128xf32, #tpu.memory_space<vmem>>, vector<8x128xf32>
      tpu.vector_store %arg9[%c0_73, %c0_74], %81 {strides = array<i32>} : memref<8x128xf32, #tpu.memory_space<vmem>>, vector<8x128xf32>,
      %c0_75 = arith.constant 0 : index
      %c0_76 = arith.constant 0 : index
      %90 = vector.load %arg10[%c0_75, %c0_76] : memref<8x128xf32, #tpu.memory_space<vmem>>, vector<8x128xf32>
      tpu.vector_store %arg10[%c0_75, %c0_76], %82 {strides = array<i32>} : memref<8x128xf32, #tpu.memory_space<vmem>>, vector<8x128xf32>,
      %c0_77 = arith.constant 0 : index
      %c0_78 = arith.constant 0 : index
      %91 = vector.load %arg11[%c0_77, %c0_78] : memref<8x128xf32, #tpu.memory_space<vmem>>, vector<8x128xf32>
      tpu.vector_store %arg11[%c0_77, %c0_78], %82 {strides = array<i32>} : memref<8x128xf32, #tpu.memory_space<vmem>>, vector<8x128xf32>,
      %c0_79 = arith.constant 0 : index
      %c0_80 = arith.constant 0 : index
      %92 = vector.load %arg12[%c0_79, %c0_80] : memref<8x128xf32, #tpu.memory_space<vmem>>, vector<8x128xf32>
      tpu.vector_store %arg12[%c0_79, %c0_80], %83 {strides = array<i32>} : memref<8x128xf32, #tpu.memory_space<vmem>>, vector<8x128xf32>,
      %c0_81 = arith.constant 0 : index
      %c0_82 = arith.constant 0 : index
      %93 = vector.load %arg13[%c0_81, %c0_82] : memref<8x128xf32, #tpu.memory_space<vmem>>, vector<8x128xf32>
      tpu.vector_store %arg13[%c0_81, %c0_82], %83 {strides = array<i32>} : memref<8x128xf32, #tpu.memory_space<vmem>>, vector<8x128xf32>,
    } else {
    }
    %c0 = arith.constant 0 : index
    %c0_1 = arith.constant 0 : index
    %3 = vector.load %arg1[%c0, %c0_1] : memref<8x128xf32, #tpu.memory_space<vmem>>, vector<8x128xf32>
    %c0_2 = arith.constant 0 : index
    %c0_3 = arith.constant 0 : index
    %4 = vector.load %arg2[%c0_2, %c0_3] : memref<8x128xf32, #tpu.memory_space<vmem>>, vector<8x128xf32>
    %5 = tpu.iota {dimensions = array<i32: 0>} : vector<8x128xi32>
    %6 = tpu.iota {dimensions = array<i32: 1>} : vector<8x128xi32>
    %c8_i32 = arith.constant 8 : i32
    %7 = arith.muli %arg0, %c8_i32 : i32
    %8 = vector.broadcast %7 : i32 to vector<8x128xi32>
    %9 = arith.addi %8, %5 : vector<8x128xi32>
    %c128_i32 = arith.constant 128 : i32
    %10 = vector.broadcast %c128_i32 : i32 to vector<8x128xi32>
    %11 = arith.muli %9, %10 : vector<8x128xi32>
    %12 = arith.addi %11, %6 : vector<8x128xi32>
    %c8_i32_4 = arith.constant 8 : i32
    %13 = vector.broadcast %c8_i32_4 : i32 to vector<8x128xi32>
    %14 = arith.cmpi slt, %12, %13 : vector<8x128xi32>
    %15 = arith.subf %3, %4 : vector<8x128xf32>
    %c0_5 = arith.constant 0 : index
    %c0_6 = arith.constant 0 : index
    %16 = vector.load %arg4[%c0_5, %c0_6] : memref<8x128xf32, #tpu.memory_space<vmem>>, vector<8x128xf32>
    %17 = vector.shape_cast %3 : vector<8x128xf32> to vector<1x8x128xf32>
    %cst = arith.constant dense<0.000000e+00> : vector<8x128xf32>
    %18 = vector.multi_reduction <add>, %17, %cst [0] : vector<1x8x128xf32> to vector<8x128xf32>
    %19 = arith.addf %16, %18 : vector<8x128xf32>
    %c0_7 = arith.constant 0 : index
    %c0_8 = arith.constant 0 : index
    %20 = vector.load %arg4[%c0_7, %c0_8] : memref<8x128xf32, #tpu.memory_space<vmem>>, vector<8x128xf32>
    tpu.vector_store %arg4[%c0_7, %c0_8], %19 {strides = array<i32>} : memref<8x128xf32, #tpu.memory_space<vmem>>, vector<8x128xf32>,
    %c0_9 = arith.constant 0 : index
    %c0_10 = arith.constant 0 : index
    %21 = vector.load %arg5[%c0_9, %c0_10] : memref<8x128xf32, #tpu.memory_space<vmem>>, vector<8x128xf32>
    %22 = vector.shape_cast %4 : vector<8x128xf32> to vector<1x8x128xf32>
    %cst_11 = arith.constant dense<0.000000e+00> : vector<8x128xf32>
    %23 = vector.multi_reduction <add>, %22, %cst_11 [0] : vector<1x8x128xf32> to vector<8x128xf32>
    %24 = arith.addf %21, %23 : vector<8x128xf32>
    %c0_12 = arith.constant 0 : index
    %c0_13 = arith.constant 0 : index
    %25 = vector.load %arg5[%c0_12, %c0_13] : memref<8x128xf32, #tpu.memory_space<vmem>>, vector<8x128xf32>
    tpu.vector_store %arg5[%c0_12, %c0_13], %24 {strides = array<i32>} : memref<8x128xf32, #tpu.memory_space<vmem>>, vector<8x128xf32>,
    %c0_14 = arith.constant 0 : index
    %c0_15 = arith.constant 0 : index
    %26 = vector.load %arg6[%c0_14, %c0_15] : memref<8x128xf32, #tpu.memory_space<vmem>>, vector<8x128xf32>
    %27 = arith.mulf %3, %3 : vector<8x128xf32>
    %28 = vector.shape_cast %27 : vector<8x128xf32> to vector<1x8x128xf32>
    %cst_16 = arith.constant dense<0.000000e+00> : vector<8x128xf32>
    %29 = vector.multi_reduction <add>, %28, %cst_16 [0] : vector<1x8x128xf32> to vector<8x128xf32>
    %30 = arith.addf %26, %29 : vector<8x128xf32>
    %c0_17 = arith.constant 0 : index
    %c0_18 = arith.constant 0 : index
    %31 = vector.load %arg6[%c0_17, %c0_18] : memref<8x128xf32, #tpu.memory_space<vmem>>, vector<8x128xf32>
    tpu.vector_store %arg6[%c0_17, %c0_18], %30 {strides = array<i32>} : memref<8x128xf32, #tpu.memory_space<vmem>>, vector<8x128xf32>,
    %c0_19 = arith.constant 0 : index
    %c0_20 = arith.constant 0 : index
    %32 = vector.load %arg7[%c0_19, %c0_20] : memref<8x128xf32, #tpu.memory_space<vmem>>, vector<8x128xf32>
    %33 = arith.mulf %4, %4 : vector<8x128xf32>
    %34 = vector.shape_cast %33 : vector<8x128xf32> to vector<1x8x128xf32>
    %cst_21 = arith.constant dense<0.000000e+00> : vector<8x128xf32>
    %35 = vector.multi_reduction <add>, %34, %cst_21 [0] : vector<1x8x128xf32> to vector<8x128xf32>
    %36 = arith.addf %32, %35 : vector<8x128xf32>
    %c0_22 = arith.constant 0 : index
    %c0_23 = arith.constant 0 : index
    %37 = vector.load %arg7[%c0_22, %c0_23] : memref<8x128xf32, #tpu.memory_space<vmem>>, vector<8x128xf32>
    tpu.vector_store %arg7[%c0_22, %c0_23], %36 {strides = array<i32>} : memref<8x128xf32, #tpu.memory_space<vmem>>, vector<8x128xf32>,
    %c0_24 = arith.constant 0 : index
    %c0_25 = arith.constant 0 : index
    %38 = vector.load %arg8[%c0_24, %c0_25] : memref<8x128xf32, #tpu.memory_space<vmem>>, vector<8x128xf32>
    %39 = arith.mulf %3, %4 : vector<8x128xf32>
    %40 = vector.shape_cast %39 : vector<8x128xf32> to vector<1x8x128xf32>
    %cst_26 = arith.constant dense<0.000000e+00> : vector<8x128xf32>
    %41 = vector.multi_reduction <add>, %40, %cst_26 [0] : vector<1x8x128xf32> to vector<8x128xf32>
    %42 = arith.addf %38, %41 : vector<8x128xf32>
    %c0_27 = arith.constant 0 : index
    %c0_28 = arith.constant 0 : index
    %43 = vector.load %arg8[%c0_27, %c0_28] : memref<8x128xf32, #tpu.memory_space<vmem>>, vector<8x128xf32>
    tpu.vector_store %arg8[%c0_27, %c0_28], %42 {strides = array<i32>} : memref<8x128xf32, #tpu.memory_space<vmem>>, vector<8x128xf32>,
    %c0_29 = arith.constant 0 : index
    %c0_30 = arith.constant 0 : index
    %44 = vector.load %arg9[%c0_29, %c0_30] : memref<8x128xf32, #tpu.memory_space<vmem>>, vector<8x128xf32>
    %45 = arith.mulf %15, %15 : vector<8x128xf32>
    %46 = vector.shape_cast %45 : vector<8x128xf32> to vector<1x8x128xf32>
    %cst_31 = arith.constant dense<0.000000e+00> : vector<8x128xf32>
    %47 = vector.multi_reduction <add>, %46, %cst_31 [0] : vector<1x8x128xf32> to vector<8x128xf32>
    %48 = arith.addf %44, %47 : vector<8x128xf32>
    %c0_32 = arith.constant 0 : index
    %c0_33 = arith.constant 0 : index
    %49 = vector.load %arg9[%c0_32, %c0_33] : memref<8x128xf32, #tpu.memory_space<vmem>>, vector<8x128xf32>
    tpu.vector_store %arg9[%c0_32, %c0_33], %48 {strides = array<i32>} : memref<8x128xf32, #tpu.memory_space<vmem>>, vector<8x128xf32>,
    %c0_34 = arith.constant 0 : index
    %c0_35 = arith.constant 0 : index
    %50 = vector.load %arg10[%c0_34, %c0_35] : memref<8x128xf32, #tpu.memory_space<vmem>>, vector<8x128xf32>
    %cst_36 = arith.constant 0x7F800000 : f32
    %51 = vector.broadcast %cst_36 : f32 to vector<8x128xf32>
    %52 = arith.select %14, %3, %51 : vector<8x128xi1>, vector<8x128xf32>
    %53 = vector.shape_cast %52 : vector<8x128xf32> to vector<1x8x128xf32>
    %cst_37 = arith.constant dense<0x7F800000> : vector<8x128xf32>
    %54 = vector.multi_reduction <minimumf>, %53, %cst_37 [0] : vector<1x8x128xf32> to vector<8x128xf32>
    %55 = arith.minimumf %50, %54 : vector<8x128xf32>
    %c0_38 = arith.constant 0 : index
    %c0_39 = arith.constant 0 : index
    %56 = vector.load %arg10[%c0_38, %c0_39] : memref<8x128xf32, #tpu.memory_space<vmem>>, vector<8x128xf32>
    tpu.vector_store %arg10[%c0_38, %c0_39], %55 {strides = array<i32>} : memref<8x128xf32, #tpu.memory_space<vmem>>, vector<8x128xf32>,
    %c0_40 = arith.constant 0 : index
    %c0_41 = arith.constant 0 : index
    %57 = vector.load %arg11[%c0_40, %c0_41] : memref<8x128xf32, #tpu.memory_space<vmem>>, vector<8x128xf32>
    %cst_42 = arith.constant 0x7F800000 : f32
    %58 = vector.broadcast %cst_42 : f32 to vector<8x128xf32>
    %59 = arith.select %14, %4, %58 : vector<8x128xi1>, vector<8x128xf32>
    %60 = vector.shape_cast %59 : vector<8x128xf32> to vector<1x8x128xf32>
    %cst_43 = arith.constant dense<0x7F800000> : vector<8x128xf32>
    %61 = vector.multi_reduction <minimumf>, %60, %cst_43 [0] : vector<1x8x128xf32> to vector<8x128xf32>
    %62 = arith.minimumf %57, %61 : vector<8x128xf32>
    %c0_44 = arith.constant 0 : index
    %c0_45 = arith.constant 0 : index
    %63 = vector.load %arg11[%c0_44, %c0_45] : memref<8x128xf32, #tpu.memory_space<vmem>>, vector<8x128xf32>
    tpu.vector_store %arg11[%c0_44, %c0_45], %62 {strides = array<i32>} : memref<8x128xf32, #tpu.memory_space<vmem>>, vector<8x128xf32>,
    %c0_46 = arith.constant 0 : index
    %c0_47 = arith.constant 0 : index
    %64 = vector.load %arg12[%c0_46, %c0_47] : memref<8x128xf32, #tpu.memory_space<vmem>>, vector<8x128xf32>
    %cst_48 = arith.constant 0xFF800000 : f32
    %65 = vector.broadcast %cst_48 : f32 to vector<8x128xf32>
    %66 = arith.select %14, %3, %65 : vector<8x128xi1>, vector<8x128xf32>
    %67 = vector.shape_cast %66 : vector<8x128xf32> to vector<1x8x128xf32>
    %cst_49 = arith.constant dense<0xFF800000> : vector<8x128xf32>
    %68 = vector.multi_reduction <maximumf>, %67, %cst_49 [0] : vector<1x8x128xf32> to vector<8x128xf32>
    %69 = arith.maximumf %64, %68 : vector<8x128xf32>
    %c0_50 = arith.constant 0 : index
    %c0_51 = arith.constant 0 : index
    %70 = vector.load %arg12[%c0_50, %c0_51] : memref<8x128xf32, #tpu.memory_space<vmem>>, vector<8x128xf32>
    tpu.vector_store %arg12[%c0_50, %c0_51], %69 {strides = array<i32>} : memref<8x128xf32, #tpu.memory_space<vmem>>, vector<8x128xf32>,
    %c0_52 = arith.constant 0 : index
    %c0_53 = arith.constant 0 : index
    %71 = vector.load %arg13[%c0_52, %c0_53] : memref<8x128xf32, #tpu.memory_space<vmem>>, vector<8x128xf32>
    %cst_54 = arith.constant 0xFF800000 : f32
    %72 = vector.broadcast %cst_54 : f32 to vector<8x128xf32>
    %73 = arith.select %14, %4, %72 : vector<8x128xi1>, vector<8x128xf32>
    %74 = vector.shape_cast %73 : vector<8x128xf32> to vector<1x8x128xf32>
    %cst_55 = arith.constant dense<0xFF800000> : vector<8x128xf32>
    %75 = vector.multi_reduction <maximumf>, %74, %cst_55 [0] : vector<1x8x128xf32> to vector<8x128xf32>
    %76 = arith.maximumf %71, %75 : vector<8x128xf32>
    %c0_56 = arith.constant 0 : index
    %c0_57 = arith.constant 0 : index
    %77 = vector.load %arg13[%c0_56, %c0_57] : memref<8x128xf32, #tpu.memory_space<vmem>>, vector<8x128xf32>
    tpu.vector_store %arg13[%c0_56, %c0_57], %76 {strides = array<i32>} : memref<8x128xf32, #tpu.memory_space<vmem>>, vector<8x128xf32>,
    %c0_i32_58 = arith.constant 0 : i32
    %78 = arith.cmpi eq, %arg0, %c0_i32_58 : i32
    %79 = arith.extui %78 : i1 to i32
    %c0_i32_59 = arith.constant 0 : i32
    %80 = arith.cmpi ne, %79, %c0_i32_59 : i32
    scf.if %80 {
      %c0_60 = arith.constant 0 : index
      %c0_61 = arith.constant 0 : index
      %81 = vector.load %arg4[%c0_60, %c0_61] : memref<8x128xf32, #tpu.memory_space<vmem>>, vector<8x128xf32>
      %82 = vector.shape_cast %81 : vector<8x128xf32> to vector<1x8x128xf32>
      %cst_62 = arith.constant dense<0.000000e+00> : vector<1xf32>
      %83 = vector.multi_reduction <add>, %82, %cst_62 [1, 2] : vector<1x8x128xf32> to vector<1xf32>
      %84 = vector.shape_cast %83 : vector<1xf32> to vector<1x1x1xf32>
      %85 = vector.extract %84[0, 0, 0] : f32 from vector<1x1x1xf32>
      %c0_63 = arith.constant 0 : index
      %c0_64 = arith.constant 0 : index
      %86 = vector.load %arg5[%c0_63, %c0_64] : memref<8x128xf32, #tpu.memory_space<vmem>>, vector<8x128xf32>
      %87 = vector.shape_cast %86 : vector<8x128xf32> to vector<1x8x128xf32>
      %cst_65 = arith.constant dense<0.000000e+00> : vector<1xf32>
      %88 = vector.multi_reduction <add>, %87, %cst_65 [1, 2] : vector<1x8x128xf32> to vector<1xf32>
      %89 = vector.shape_cast %88 : vector<1xf32> to vector<1x1x1xf32>
      %90 = vector.extract %89[0, 0, 0] : f32 from vector<1x1x1xf32>
      %c0_66 = arith.constant 0 : index
      %c0_67 = arith.constant 0 : index
      %91 = vector.load %arg6[%c0_66, %c0_67] : memref<8x128xf32, #tpu.memory_space<vmem>>, vector<8x128xf32>
      %92 = vector.shape_cast %91 : vector<8x128xf32> to vector<1x8x128xf32>
      %cst_68 = arith.constant dense<0.000000e+00> : vector<1xf32>
      %93 = vector.multi_reduction <add>, %92, %cst_68 [1, 2] : vector<1x8x128xf32> to vector<1xf32>
      %94 = vector.shape_cast %93 : vector<1xf32> to vector<1x1x1xf32>
      %95 = vector.extract %94[0, 0, 0] : f32 from vector<1x1x1xf32>
      %c0_69 = arith.constant 0 : index
      %c0_70 = arith.constant 0 : index
      %96 = vector.load %arg7[%c0_69, %c0_70] : memref<8x128xf32, #tpu.memory_space<vmem>>, vector<8x128xf32>
      %97 = vector.shape_cast %96 : vector<8x128xf32> to vector<1x8x128xf32>
      %cst_71 = arith.constant dense<0.000000e+00> : vector<1xf32>
      %98 = vector.multi_reduction <add>, %97, %cst_71 [1, 2] : vector<1x8x128xf32> to vector<1xf32>
      %99 = vector.shape_cast %98 : vector<1xf32> to vector<1x1x1xf32>
      %100 = vector.extract %99[0, 0, 0] : f32 from vector<1x1x1xf32>
      %c0_72 = arith.constant 0 : index
      %c0_73 = arith.constant 0 : index
      %101 = vector.load %arg8[%c0_72, %c0_73] : memref<8x128xf32, #tpu.memory_space<vmem>>, vector<8x128xf32>
      %102 = vector.shape_cast %101 : vector<8x128xf32> to vector<1x8x128xf32>
      %cst_74 = arith.constant dense<0.000000e+00> : vector<1xf32>
      %103 = vector.multi_reduction <add>, %102, %cst_74 [1, 2] : vector<1x8x128xf32> to vector<1xf32>
      %104 = vector.shape_cast %103 : vector<1xf32> to vector<1x1x1xf32>
      %105 = vector.extract %104[0, 0, 0] : f32 from vector<1x1x1xf32>
      %c0_75 = arith.constant 0 : index
      %c0_76 = arith.constant 0 : index
      %106 = vector.load %arg9[%c0_75, %c0_76] : memref<8x128xf32, #tpu.memory_space<vmem>>, vector<8x128xf32>
      %107 = vector.shape_cast %106 : vector<8x128xf32> to vector<1x8x128xf32>
      %cst_77 = arith.constant dense<0.000000e+00> : vector<1xf32>
      %108 = vector.multi_reduction <add>, %107, %cst_77 [1, 2] : vector<1x8x128xf32> to vector<1xf32>
      %109 = vector.shape_cast %108 : vector<1xf32> to vector<1x1x1xf32>
      %110 = vector.extract %109[0, 0, 0] : f32 from vector<1x1x1xf32>
      %cst_78 = arith.constant 8.000000e+00 : f32
      %111 = arith.divf %85, %cst_78 : f32
      %cst_79 = arith.constant 8.000000e+00 : f32
      %112 = arith.divf %90, %cst_79 : f32
      %cst_80 = arith.constant 8.000000e+00 : f32
      %113 = arith.divf %110, %cst_80 : f32
      %cst_81 = arith.constant 8.000000e+00 : f32
      %114 = arith.mulf %cst_81, %111 : f32
      %115 = arith.mulf %114, %112 : f32
      %116 = arith.subf %105, %115 : f32
      %cst_82 = arith.constant 8.000000e+00 : f32
      %117 = arith.mulf %cst_82, %111 : f32
      %118 = arith.mulf %117, %111 : f32
      %119 = arith.subf %95, %118 : f32
      %cst_83 = arith.constant 0.000000e+00 : f32
      %120 = arith.maximumf %119, %cst_83 : f32
      %cst_84 = arith.constant 8.000000e+00 : f32
      %121 = arith.mulf %cst_84, %112 : f32
      %122 = arith.mulf %121, %112 : f32
      %123 = arith.subf %100, %122 : f32
      %cst_85 = arith.constant 0.000000e+00 : f32
      %124 = arith.maximumf %123, %cst_85 : f32
      %125 = arith.mulf %120, %124 : f32
      %cst_86 = arith.constant 0.000000e+00 : f32
      %126 = arith.cmpf ogt, %125, %cst_86 : f32
      %cst_87 = arith.constant 1.000000e+00 : f32
      %127 = arith.select %126, %125, %cst_87 : f32
      %cst_88 = arith.constant 0.000000e+00 : f32
      %128 = arith.cmpf ogt, %125, %cst_88 : f32
      %129 = math.rsqrt %127 : f32
      %130 = arith.mulf %116, %129 : f32
      %cst_89 = arith.constant 0x7FC00000 : f32
      %131 = arith.select %128, %130, %cst_89 : f32
      %c0_90 = arith.constant 0 : index
      %132 = memref.load %arg3[%c0_90] : memref<8xf32, #tpu.memory_space<smem>>
      memref.store %113, %arg3[%c0_90] : memref<8xf32, #tpu.memory_space<smem>>
      %c1 = arith.constant 1 : index
      %133 = memref.load %arg3[%c1] : memref<8xf32, #tpu.memory_space<smem>>
      memref.store %111, %arg3[%c1] : memref<8xf32, #tpu.memory_space<smem>>
      %c2 = arith.constant 2 : index
      %134 = memref.load %arg3[%c2] : memref<8xf32, #tpu.memory_space<smem>>
      memref.store %112, %arg3[%c2] : memref<8xf32, #tpu.memory_space<smem>>
      %c0_91 = arith.constant 0 : index
      %c0_92 = arith.constant 0 : index
      %135 = vector.load %arg10[%c0_91, %c0_92] : memref<8x128xf32, #tpu.memory_space<vmem>>, vector<8x128xf32>
      %136 = vector.shape_cast %135 : vector<8x128xf32> to vector<1x8x128xf32>
      %cst_93 = arith.constant dense<0x7F800000> : vector<1xf32>
      %137 = vector.multi_reduction <minimumf>, %136, %cst_93 [1, 2] : vector<1x8x128xf32> to vector<1xf32>
      %138 = vector.shape_cast %137 : vector<1xf32> to vector<1x1x1xf32>
      %139 = vector.extract %138[0, 0, 0] : f32 from vector<1x1x1xf32>
      %c3 = arith.constant 3 : index
      %140 = memref.load %arg3[%c3] : memref<8xf32, #tpu.memory_space<smem>>
      memref.store %139, %arg3[%c3] : memref<8xf32, #tpu.memory_space<smem>>
      %c0_94 = arith.constant 0 : index
      %c0_95 = arith.constant 0 : index
      %141 = vector.load %arg11[%c0_94, %c0_95] : memref<8x128xf32, #tpu.memory_space<vmem>>, vector<8x128xf32>
      %142 = vector.shape_cast %141 : vector<8x128xf32> to vector<1x8x128xf32>
      %cst_96 = arith.constant dense<0x7F800000> : vector<1xf32>
      %143 = vector.multi_reduction <minimumf>, %142, %cst_96 [1, 2] : vector<1x8x128xf32> to vector<1xf32>
      %144 = vector.shape_cast %143 : vector<1xf32> to vector<1x1x1xf32>
      %145 = vector.extract %144[0, 0, 0] : f32 from vector<1x1x1xf32>
      %c4 = arith.constant 4 : index
      %146 = memref.load %arg3[%c4] : memref<8xf32, #tpu.memory_space<smem>>
      memref.store %145, %arg3[%c4] : memref<8xf32, #tpu.memory_space<smem>>
      %c0_97 = arith.constant 0 : index
      %c0_98 = arith.constant 0 : index
      %147 = vector.load %arg12[%c0_97, %c0_98] : memref<8x128xf32, #tpu.memory_space<vmem>>, vector<8x128xf32>
      %148 = vector.shape_cast %147 : vector<8x128xf32> to vector<1x8x128xf32>
      %cst_99 = arith.constant dense<0xFF800000> : vector<1xf32>
      %149 = vector.multi_reduction <maximumf>, %148, %cst_99 [1, 2] : vector<1x8x128xf32> to vector<1xf32>
      %150 = vector.shape_cast %149 : vector<1xf32> to vector<1x1x1xf32>
      %151 = vector.extract %150[0, 0, 0] : f32 from vector<1x1x1xf32>
      %c5 = arith.constant 5 : index
      %152 = memref.load %arg3[%c5] : memref<8xf32, #tpu.memory_space<smem>>
      memref.store %151, %arg3[%c5] : memref<8xf32, #tpu.memory_space<smem>>
      %c0_100 = arith.constant 0 : index
      %c0_101 = arith.constant 0 : index
      %153 = vector.load %arg13[%c0_100, %c0_101] : memref<8x128xf32, #tpu.memory_space<vmem>>, vector<8x128xf32>
      %154 = vector.shape_cast %153 : vector<8x128xf32> to vector<1x8x128xf32>
      %cst_102 = arith.constant dense<0xFF800000> : vector<1xf32>
      %155 = vector.multi_reduction <maximumf>, %154, %cst_102 [1, 2] : vector<1x8x128xf32> to vector<1xf32>
      %156 = vector.shape_cast %155 : vector<1xf32> to vector<1x1x1xf32>
      %157 = vector.extract %156[0, 0, 0] : f32 from vector<1x1x1xf32>
      %c6 = arith.constant 6 : index
      %158 = memref.load %arg3[%c6] : memref<8xf32, #tpu.memory_space<smem>>
      memref.store %157, %arg3[%c6] : memref<8xf32, #tpu.memory_space<smem>>
      %c7 = arith.constant 7 : index
      %159 = memref.load %arg3[%c7] : memref<8xf32, #tpu.memory_space<smem>>
      memref.store %131, %arg3[%c7] : memref<8xf32, #tpu.memory_space<smem>>
    } else {
    }
    return
  }
  func.func @transform_0(%arg0: i32) -> (i32, i32) {
    %c0_i32 = arith.constant 0 : i32
    %c0_i32_0 = arith.constant 0 : i32
    return %arg0, %c0_i32 : i32, i32
  }
  func.func @transform_1(%arg0: i32) -> (i32, i32) {
    %c0_i32 = arith.constant 0 : i32
    %c0_i32_0 = arith.constant 0 : i32
    return %arg0, %c0_i32 : i32, i32
  }
  func.func @transform_2(%arg0: i32) -> i32 {
    %c0_i32 = arith.constant 0 : i32
    %c0_i32_0 = arith.constant 0 : i32
    return %c0_i32 : i32
  }
}

</mosaic_0001>

<llo_original>
// kernel: tpu_custom_call.1
$region0: #{tpu_custom_call.1}
  #allocation0 [shape = 'u32[]', space=smem, size = 0x4, offset = 0x4, fixed_abs, tag = 'smem constant byte address 0x4 - core index']
  #allocation1 [shape = 'u32[72,128]{1,0:T(1,128)}', space=vmem, size = 0x9000, scoped, tag = 'internal scratch']
  #allocation2 [shape = 'f32[8,128]{1,0:T(8,128)}', space=vmem, size = 0x1000, scoped, tag = 'scratch operand']
  #allocation3 [shape = 'f32[8,128]{1,0:T(8,128)}', space=vmem, size = 0x1000, scoped, tag = 'scratch operand']
  #allocation4 [shape = 'f32[8,128]{1,0:T(8,128)}', space=vmem, size = 0x1000, scoped, tag = 'scratch operand']
  #allocation5 [shape = 'f32[8,128]{1,0:T(8,128)}', space=vmem, size = 0x1000, scoped, tag = 'scratch operand']
  #allocation6 [shape = 'f32[8,128]{1,0:T(8,128)}', space=vmem, size = 0x1000, scoped, tag = 'scratch operand']
  #allocation7 [shape = 'f32[8,128]{1,0:T(8,128)}', space=vmem, size = 0x1000, scoped, tag = 'scratch operand']
  #allocation8 [shape = 'f32[8,128]{1,0:T(8,128)}', space=vmem, size = 0x1000, scoped, tag = 'scratch operand']
  #allocation9 [shape = 'f32[8,128]{1,0:T(8,128)}', space=vmem, size = 0x1000, scoped, tag = 'scratch operand']
  #allocation10 [shape = 'f32[8,128]{1,0:T(8,128)}', space=vmem, size = 0x1000, scoped, tag = 'scratch operand']
  #allocation11 [shape = 'f32[8,128]{1,0:T(8,128)}', space=vmem, size = 0x1000, scoped, tag = 'scratch operand']
  %s0 = inlined_call_operand.hbm [shape: f32[8,128], index: 0, kind: input, shape index: {}]
  %s1 = inlined_call_operand.hbm [shape: f32[8,128], index: 1, kind: input, shape index: {}]
  %s2 = inlined_call_operand.hbm [shape: f32[8], index: 2, kind: output, shape index: {}]
  %s3 = sld [smem:[#allocation0]]
  $region34: #{tpu_custom_call.1} parent=0
    _
  %s5 = ssub.s32 1, %s3
  %s6 = scalar_select 0, %s5, %s3
  $region1: #{tpu_custom_call.1} parent=0
    #allocation12 [shape = 'u8[4096]{0}', space=vmem, size = 0x1000, scoped, tag = 'input window, operand 0, single buffered']
    #allocation13 [shape = 's32[1]{0}', space=sflag, size = 0x4, scoped, tag = 'scoped memory for tpu_custom_call.1']
    #allocation14 [shape = 's32[1]{0}', space=sflag, size = 0x4, scoped, tag = 'scoped memory for tpu_custom_call.1']
    #allocation15 [shape = 'u8[4096]{0}', space=vmem, size = 0x1000, scoped, tag = 'input window, operand 1, single buffered']
    #allocation16 [shape = 's32[1]{0}', space=sflag, size = 0x4, scoped, tag = 'scoped memory for tpu_custom_call.1']
    #allocation17 [shape = 'u8[512]{0}', space=smem, size = 0x200, scoped, tag = 'output window, operand 0, single buffered']
    %7 = vsyncpa [#allocation13], 0
    %8 = vsyncpa [#allocation16], 0
    %9 = vsyncpa [#allocation14], 0
    // Predicated region
    $region2: #{tpu_custom_call.1} parent=1 // pred_check
      _
    $region3: #{tpu_custom_call.1} parent=1 // pred_check_branch
      %11 = sbr.rel (0) target = $region5
    $region4: #{tpu_custom_call.1} parent=1 // pred_region
      %13 = vsyncadd [#allocation13], 0
      %s15 = sshll.u32 %s0, 4
      %s16 = int_to_ptr.hbm [resolvable:$true] %s15
      %s17 = sshll.u32 [#allocation12], 4
      %s18 = int_to_ptr.vmem [resolvable:$true] %s17
      %20 = dma.hbm_to_vmem [thread:$0]  %s16, 128, %s18, [#allocation13]
    $region5: #{tpu_custom_call.1} parent=1 // pred_fallthru
      _
    // Predicated region
    $region6: #{tpu_custom_call.1} parent=1 // pred_check
      _
    $region7: #{tpu_custom_call.1} parent=1 // pred_check_branch
      %22 = sbr.rel (0) target = $region9
    $region8: #{tpu_custom_call.1} parent=1 // pred_region
      %24 = vsyncadd [#allocation16], 0
      %s26 = sshll.u32 %s1, 4
      %s27 = int_to_ptr.hbm [resolvable:$true] %s26
      %s28 = sshll.u32 [#allocation15], 4
      %s29 = int_to_ptr.vmem [resolvable:$true] %s28
      %31 = dma.hbm_to_vmem [thread:$0]  %s27, 128, %s29, [#allocation16]
    $region9: #{tpu_custom_call.1} parent=1 // pred_fallthru
      _
    // Predicated region
    $region10: #{tpu_custom_call.1} parent=1 // pred_check
      _
    $region11: #{tpu_custom_call.1} parent=1 // pred_check_branch
      %33 = sbr.rel (0) target = $region13
    $region12: #{tpu_custom_call.1} parent=1 // pred_region
      %35 = dma.done [#allocation13], 128
    $region13: #{tpu_custom_call.1} parent=1 // pred_fallthru
      _
    // Predicated region
    $region14: #{tpu_custom_call.1} parent=1 // pred_check
      _
    $region15: #{tpu_custom_call.1} parent=1 // pred_check_branch
      %37 = sbr.rel (0) target = $region17
    $region16: #{tpu_custom_call.1} parent=1 // pred_region
      %39 = dma.done [#allocation16], 128
    $region17: #{tpu_custom_call.1} parent=1 // pred_fallthru
      _
    %p40 = scmp.eq.s32.totalorder 0, 0
    // Predicated region
    $region18: #{tpu_custom_call.1} parent=1 // pred_check
      %p41 = pneg %p40
    $region19: #{tpu_custom_call.1} parent=1 // pred_check_branch
      %43 = sbr.rel (%p41) target = $region21
    $region20: #{tpu_custom_call.1} parent=1 // pred_region
      %44 = vst [vmem:[#allocation2] sm:$0xff] 0.0
      %45 = vst [vmem:[#allocation3] sm:$0xff] 0.0
      %46 = vst [vmem:[#allocation4] sm:$0xff] 0.0
      %47 = vst [vmem:[#allocation5] sm:$0xff] 0.0
      %48 = vst [vmem:[#allocation6] sm:$0xff] 0.0
      %49 = vst [vmem:[#allocation7] sm:$0xff] 0.0
      %50 = vst [vmem:[#allocation8] sm:$0xff] inf
      %51 = vst [vmem:[#allocation9] sm:$0xff] inf
      %52 = vst [vmem:[#allocation10] sm:$0xff] -inf
      %53 = vst [vmem:[#allocation11] sm:$0xff] -inf
    $region21: #{tpu_custom_call.1} parent=1 // pred_fallthru
      _
    %v54 = vld [vmem:[#allocation12] sm:$0xff]
    %v55 = vld [vmem:[#allocation15] sm:$0xff]
    %v56 = vlaneseq
    %v57 = vshrl.u32 %v56, 7
    %v58 = vlaneseq
    %v59 = vand.u32 %v58, 127
    %s60 = smul.u32 0, 8
    %v61 = vstv %s60
    %v62 = vadd.s32 %v61, %v57
    %v63 = vmul.u32 %v62, 128
    %v64 = vadd.s32 %v63, %v59
    %vm65 = vcmp.lt.s32.totalorder %v64, 8
    %v66 = vsub.f32 %v54, %v55
    %v67 = vld [vmem:[#allocation2] sm:$0xff]
    %v68 = vadd.f32 %v54, 0.0
    %v69 = vadd.f32 %v67, %v68
    %70 = vst [vmem:[#allocation2] sm:$0xff] %v69
    %v71 = vld [vmem:[#allocation3] sm:$0xff]
    %v72 = vadd.f32 %v55, 0.0
    %v73 = vadd.f32 %v71, %v72
    %74 = vst [vmem:[#allocation3] sm:$0xff] %v73
    %v75 = vld [vmem:[#allocation4] sm:$0xff]
    %v76 = vmul.f32 %v54, %v54
    %v77 = vadd.f32 %v76, 0.0
    %v78 = vadd.f32 %v75, %v77
    %79 = vst [vmem:[#allocation4] sm:$0xff] %v78
    %v80 = vld [vmem:[#allocation5] sm:$0xff]
    %v81 = vmul.f32 %v55, %v55
    %v82 = vadd.f32 %v81, 0.0
    %v83 = vadd.f32 %v80, %v82
    %84 = vst [vmem:[#allocation5] sm:$0xff] %v83
    %v85 = vld [vmem:[#allocation6] sm:$0xff]
    %v86 = vmul.f32 %v54, %v55
    %v87 = vadd.f32 %v86, 0.0
    %v88 = vadd.f32 %v85, %v87
    %89 = vst [vmem:[#allocation6] sm:$0xff] %v88
    %v90 = vld [vmem:[#allocation7] sm:$0xff]
    %v91 = vmul.f32 %v66, %v66
    %v92 = vadd.f32 %v91, 0.0
    %v93 = vadd.f32 %v90, %v92
    %94 = vst [vmem:[#allocation7] sm:$0xff] %v93
    %v95 = vld [vmem:[#allocation8] sm:$0xff]
    %v96 = vsel %vm65, %v54, inf
    %v97 = vmin.f32 %v95, %v96
    %98 = vst [vmem:[#allocation8] sm:$0xff] %v97
    %v99 = vld [vmem:[#allocation9] sm:$0xff]
    %v100 = vsel %vm65, %v55, inf
    %v101 = vmin.f32 %v99, %v100
    %102 = vst [vmem:[#allocation9] sm:$0xff] %v101
    %v103 = vld [vmem:[#allocation10] sm:$0xff]
    %v104 = vsel %vm65, %v54, -inf
    %v105 = vmax.f32 %v103, %v104
    %106 = vst [vmem:[#allocation10] sm:$0xff] %v105
    %v107 = vld [vmem:[#allocation11] sm:$0xff]
    %v108 = vsel %vm65, %v55, -inf
    %v109 = vmax.f32 %v107, %v108
    %110 = vst [vmem:[#allocation11] sm:$0xff] %v109
    // Predicated region
    $region22: #{tpu_custom_call.1} parent=1 // pred_check
      %p111 = pneg %p40
    $region23: #{tpu_custom_call.1} parent=1 // pred_check_branch
      %113 = sbr.rel (%p111) target = $region25
    $region24: #{tpu_custom_call.1} parent=1 // pred_region
      %v114 = vld [vmem:[#allocation2] sm:$0xff]
      %115 = vadd.xlane.f32.xlu0 %v114
      %v116 = vpop.xlane.xlu0 %115
      %v117 = vrot.slane %v116, 4
      %v118 = vadd.f32 %v116, %v117
      %v119 = vrot.slane %v118, 2
      %v120 = vadd.f32 %v118, %v119
      %v121 = vrot.slane %v120, 1
      %v122 = vadd.f32 %v120, %v121
      %s123 = vtos %v122
      %v124 = vld [vmem:[#allocation3] sm:$0xff]
      %125 = vadd.xlane.f32.xlu0 %v124
      %v126 = vpop.xlane.xlu0 %125
      %v127 = vrot.slane %v126, 4
      %v128 = vadd.f32 %v126, %v127
      %v129 = vrot.slane %v128, 2
      %v130 = vadd.f32 %v128, %v129
      %v131 = vrot.slane %v130, 1
      %v132 = vadd.f32 %v130, %v131
      %s133 = vtos %v132
      %v134 = vld [vmem:[#allocation4] sm:$0xff]
      %135 = vadd.xlane.f32.xlu0 %v134
      %v136 = vpop.xlane.xlu0 %135
      %v137 = vrot.slane %v136, 4
      %v138 = vadd.f32 %v136, %v137
      %v139 = vrot.slane %v138, 2
      %v140 = vadd.f32 %v138, %v139
      %v141 = vrot.slane %v140, 1
      %v142 = vadd.f32 %v140, %v141
      %s143 = vtos %v142
      %v144 = vld [vmem:[#allocation5] sm:$0xff]
      %145 = vadd.xlane.f32.xlu0 %v144
      %v146 = vpop.xlane.xlu0 %145
      %v147 = vrot.slane %v146, 4
      %v148 = vadd.f32 %v146, %v147
      %v149 = vrot.slane %v148, 2
      %v150 = vadd.f32 %v148, %v149
      %v151 = vrot.slane %v150, 1
      %v152 = vadd.f32 %v150, %v151
      %s153 = vtos %v152
      %v154 = vld [vmem:[#allocation6] sm:$0xff]
      %155 = vadd.xlane.f32.xlu0 %v154
      %v156 = vpop.xlane.xlu0 %155
      %v157 = vrot.slane %v156, 4
      %v158 = vadd.f32 %v156, %v157
      %v159 = vrot.slane %v158, 2
      %v160 = vadd.f32 %v158, %v159
      %v161 = vrot.slane %v160, 1
      %v162 = vadd.f32 %v160, %v161
      %s163 = vtos %v162
      %v164 = vld [vmem:[#allocation7] sm:$0xff]
      %165 = vadd.xlane.f32.xlu0 %v164
      %v166 = vpop.xlane.xlu0 %165
      %v167 = vrot.slane %v166, 4
      %v168 = vadd.f32 %v166, %v167
      %v169 = vrot.slane %v168, 2
      %v170 = vadd.f32 %v168, %v169
      %v171 = vrot.slane %v170, 1
      %v172 = vadd.f32 %v170, %v171
      %s173 = vtos %v172
      %v174 = vrcp.pop 8.0
      %v175 = vmul.f32 8.0, %v174
      %v176 = vsub.f32 1.0, %v175
      %v177 = vmul.f32 %v174, %v176
      %v178 = vadd.f32 %v174, %v177
      %vm179 = vweird.f32 %v174
      %v180 = vsel %vm179, %v174, %v178
      %s181 = vtos %v180
      %s182 = smul.f32 %s123, %s181
      %v183 = vrcp.pop 8.0
      %v184 = vmul.f32 8.0, %v183
      %v185 = vsub.f32 1.0, %v184
      %v186 = vmul.f32 %v183, %v185
      %v187 = vadd.f32 %v183, %v186
      %vm188 = vweird.f32 %v183
      %v189 = vsel %vm188, %v183, %v187
      %s190 = vtos %v189
      %s191 = smul.f32 %s133, %s190
      %v192 = vrcp.pop 8.0
      %v193 = vmul.f32 8.0, %v192
      %v194 = vsub.f32 1.0, %v193
      %v195 = vmul.f32 %v192, %v194
      %v196 = vadd.f32 %v192, %v195
      %vm197 = vweird.f32 %v192
      %v198 = vsel %vm197, %v192, %v196
      %s199 = vtos %v198
      %s200 = smul.f32 %s173, %s199
      %s201 = smul.f32 %s182, 8.0
      %s202 = smul.f32 %s201, %s191
      %s203 = ssub.f32 %s163, %s202
      %s204 = smul.f32 %s201, %s182
      %s205 = ssub.f32 %s143, %s204
      %s206 = smax.f32 %s205, 0.0
      %s207 = smul.f32 %s191, 8.0
      %s208 = smul.f32 %s207, %s191
      %s209 = ssub.f32 %s153, %s208
      %s210 = smax.f32 %s209, 0.0
      %s211 = smul.f32 %s206, %s210
      %p212 = scmp.gt.f32.partialorder %s211, 0.0
      %s213 = scalar_select %p212, %s211, 1.0
      %v214 = vstv %s213
      %v215 = vrsqrt.pop %v214
      %v216 = vmul.f32 %v215, %v214
      %v217 = vmul.f32 %v216, %v215
      %v218 = vmul.f32 0.5, %v217
      %v219 = vsub.f32 1.5, %v218
      %v220 = vmul.f32 %v215, %v219
      %vm221 = vweird.f32 %v214
      %vm222 = vweird.f32 %v215
      %vm223 = vmor %vm221, %vm222
      %v224 = vsel %vm223, %v215, %v220
      %s225 = vtos %v224
      %s226 = smul.f32 %s203, %s225
      %s227 = scalar_select %p212, %s226, nan
      %s228 = scalar_lea.smem [#allocation17], 0
      %229 = sst [smem:[%s228]] %s200
      %s230 = scalar_lea.smem [#allocation17], 1
      %231 = sst [smem:[%s230]] %s182
      %s232 = scalar_lea.smem [#allocation17], 2
      %233 = sst [smem:[%s232]] %s191
      %v234 = vld [vmem:[#allocation8] sm:$0xff]
      %235 = vmin.xlane.f32.xlu0 %v234
      %v236 = vpop.xlane.xlu0 %235
      %v237 = vrot.slane %v236, 4
      %v238 = vmin.f32 %v236, %v237
      %v239 = vrot.slane %v238, 2
      %v240 = vmin.f32 %v238, %v239
      %v241 = vrot.slane %v240, 1
      %v242 = vmin.f32 %v240, %v241
      %s243 = vtos %v242
      %s244 = scalar_lea.smem [#allocation17], 3
      %245 = sst [smem:[%s244]] %s243
      %v246 = vld [vmem:[#allocation9] sm:$0xff]
      %247 = vmin.xlane.f32.xlu0 %v246
      %v248 = vpop.xlane.xlu0 %247
      %v249 = vrot.slane %v248, 4
      %v250 = vmin.f32 %v248, %v249
      %v251 = vrot.slane %v250, 2
      %v252 = vmin.f32 %v250, %v251
      %v253 = vrot.slane %v252, 1
      %v254 = vmin.f32 %v252, %v253
      %s255 = vtos %v254
      %s256 = scalar_lea.smem [#allocation17], 4
      %257 = sst [smem:[%s256]] %s255
      %v258 = vld [vmem:[#allocation10] sm:$0xff]
      %259 = vmax.xlane.f32.xlu0 %v258
      %v260 = vpop.xlane.xlu0 %259
      %v261 = vrot.slane %v260, 4
      %v262 = vmax.f32 %v260, %v261
      %v263 = vrot.slane %v262, 2
      %v264 = vmax.f32 %v262, %v263
      %v265 = vrot.slane %v264, 1
      %v266 = vmax.f32 %v264, %v265
      %s267 = vtos %v266
      %s268 = scalar_lea.smem [#allocation17], 5
      %269 = sst [smem:[%s268]] %s267
      %v270 = vld [vmem:[#allocation11] sm:$0xff]
      %271 = vmax.xlane.f32.xlu0 %v270
      %v272 = vpop.xlane.xlu0 %271
      %v273 = vrot.slane %v272, 4
      %v274 = vmax.f32 %v272, %v273
      %v275 = vrot.slane %v274, 2
      %v276 = vmax.f32 %v274, %v275
      %v277 = vrot.slane %v276, 1
      %v278 = vmax.f32 %v276, %v277
      %s279 = vtos %v278
      %s280 = scalar_lea.smem [#allocation17], 6
      %281 = sst [smem:[%s280]] %s279
      %s282 = scalar_lea.smem [#allocation17], 7
      %283 = sst [smem:[%s282]] %s227
    $region25: #{tpu_custom_call.1} parent=1 // pred_fallthru
      _
    // Predicated region
    $region26: #{tpu_custom_call.1} parent=1 // pred_check
      _
    $region27: #{tpu_custom_call.1} parent=1 // pred_check_branch
      %285 = sbr.rel (0) target = $region29
    $region28: #{tpu_custom_call.1} parent=1 // pred_region
      %287 = vsyncadd [#allocation14], 0
      %s289 = sshll.u32 %s2, 4
      %s290 = int_to_ptr.hbm [resolvable:$true] %s289
      %292 = dma.smem_to_hbm [#allocation17], 16, %s290, [#allocation14]
    $region29: #{tpu_custom_call.1} parent=1 // pred_fallthru
      _
    // Predicated region
    $region30: #{tpu_custom_call.1} parent=1 // pred_check
      _
    $region31: #{tpu_custom_call.1} parent=1 // pred_check_branch
      %294 = sbr.rel (0) target = $region33
    $region32: #{tpu_custom_call.1} parent=1 // pred_region
      %296 = dma.done [#allocation14], 16
    $region33: #{tpu_custom_call.1} parent=1 // pred_fallthru
      _
    %297 = sfence
    %298 = vsyncpa [#allocation13], 1
    %299 = vsyncpa [#allocation16], 1
    %300 = vsyncpa [#allocation14], 1

</llo_original>
